<compile_context>
chip_gen: v6e
topology: v6e:2x2x1
jax: 0.10.0
libtpu: 0.0.40
codegen_flags: <defaults>
</compile_context>

<pallas_src>
import functools

import numpy as np
import jax
import jax.numpy as jnp
from jax.experimental import pallas as pl
from jax.experimental.pallas import tpu as pltpu

POOL_SIZE = 3
PAD = POOL_SIZE // 2  # = 1
LANE = 128


def _pooling_constants(H, W, P_pad):
    """(5, P_pad) f32 trace-time constants (row masks + folded col coeffs)."""
    P = H * W
    idx = np.arange(P_pad)
    valid = idx < P
    m_hm = ((idx >= W) & valid).astype(np.float32)           # x[h-1, w] exists
    m_hp = ((idx < P - W) & valid).astype(np.float32)        # x[h+1, w] exists
    m_wm = ((idx % W != 0) & valid).astype(np.float32)       # x[h, w-1] exists
    m_wp = ((idx % W != W - 1) & valid).astype(np.float32)   # x[h, w+1] exists
    rcnt = 1.0 + m_hm + m_hp                                  # 2 or 3 valid rows
    ccnt = 1.0 + m_wm + m_wp                                  # 2 or 3 valid cols
    inv_cnt = np.where(valid, 1.0 / (rcnt * ccnt), 0.0).astype(np.float32)
    a_l = (m_wm * inv_cnt).astype(np.float32)
    a_r = (m_wp * inv_cnt).astype(np.float32)
    return np.stack([m_hm, m_hp, inv_cnt, a_l, a_r], axis=0)


def _pooling_kernel(c_ref, x_ref, o_ref, *, W):
    # c_ref: (5, P_pad) constants; x_ref/o_ref: (tm, P_pad) tiles, one image
    # plane (H, W) flattened per row.
    x = x_ref[...].astype(jnp.float32)
    P = x.shape[-1]

    c = c_ref[...]
    m_hm = c[0:1, :]
    m_hp = c[1:2, :]
    inv_c = c[2:3, :]
    a_l = c[3:4, :]
    a_r = c[4:5, :]

    # --- separable 3x3 box sum on the flattened lane axis ------------------
    # neighbour x[i - d] == roll(x, shift=d); wrapped elements are zeroed by
    # the constant masks (count_include_pad=False semantics).
    up = jnp.roll(x, W, axis=1)          # x[h-1, w]
    down = jnp.roll(x, P - W, axis=1)    # x[h+1, w]
    rsum = x + up * m_hm + down * m_hp   # sum over dh (masked)

    left = jnp.roll(rsum, 1, axis=1)     # rsum[h, w-1]
    right = jnp.roll(rsum, P - 1, axis=1)  # rsum[h, w+1]

    # avg - x, with the column masks pre-folded into a_l / a_r / inv_c.
    o_ref[...] = (rsum * inv_c + left * a_l + right * a_r - x).astype(o_ref.dtype)


def _choose_tile_rows(N, P_pad, itemsize):
    """Row-block size: count live f32 intermediates, keep >=4 blocks on big inputs."""
    # Per element: 2x double-buffered in + out blocks, plus ~6 live full-tile
    # f32 temporaries (x upcast, up/down, rsum, left/right) in Mosaic scratch.
    per_elem = 2 * 2 * itemsize + 6 * 4
    budget = 10 << 20  # total footprint target; inside v5e's 16 MiB default
    tm = budget // (per_elem * P_pad)
    tm = max(8, (tm // 8) * 8)

    total_bytes = N * P_pad * itemsize
    if total_bytes > (512 << 10):
        # Never a single block on non-trivial inputs: keep >= 4 blocks so both
        # v7x TensorCores get work and the DMA/compute pipeline overlaps.
        tm = min(tm, max(8, ((N // 4) // 8) * 8))

    tm = min(tm, N)
    if tm < N:
        tm = max(8, (tm // 8) * 8)  # blocks smaller than the array: multiple of 8
    return tm


def pooling(x):
    """x: (B, C, H, W) -> AvgPool2d(3,1,1,count_include_pad=False)(x) - x."""
    B, C, H, W = x.shape
    N, P = B * C, H * W
    P_pad = -(-P // LANE) * LANE  # lane-dense last dim (multiple of 128)

    x2 = x.reshape(N, P)
    if P_pad != P:
        x2 = jnp.pad(x2, ((0, 0), (0, P_pad - P)))

    consts = jnp.asarray(_pooling_constants(H, W, P_pad))

    tm = _choose_tile_rows(N, P_pad, x2.dtype.itemsize)
    grid = (pl.cdiv(N, tm),)

    kernel = functools.partial(_pooling_kernel, W=W)
    out2 = pl.pallas_call(
        kernel,
        out_shape=jax.ShapeDtypeStruct((N, P_pad), x.dtype),
        grid_spec=pltpu.PrefetchScalarGridSpec(
            num_scalar_prefetch=0,
            grid=grid,
            in_specs=[
                pl.BlockSpec((5, P_pad), lambda i: (0, 0)),     # constants
                pl.BlockSpec((tm, P_pad), lambda i: (i, 0)),    # x rows
            ],
            out_specs=pl.BlockSpec((tm, P_pad), lambda i: (i, 0)),
        ),
        compiler_params=pltpu.CompilerParams(
            dimension_semantics=("parallel",),
            vmem_limit_bytes=32 << 20,
        ),
    )(consts, x2)

    if P_pad != P:
        out2 = out2[:, :P]
    return out2.reshape(B, C, H, W)


def pooling_reference(x):
    """Pure-JAX reference: AvgPool2d(3, stride=1, pad=1, count_include_pad=False) - x."""
    B, C, H, W = x.shape
    xp = jnp.pad(x, ((0, 0), (0, 0), (PAD, PAD), (PAD, PAD)))
    op = jnp.pad(jnp.ones_like(x), ((0, 0), (0, 0), (PAD, PAD), (PAD, PAD)))
    s = jnp.zeros_like(x)
    c = jnp.zeros_like(x)
    for dh in range(POOL_SIZE):
        for dw in range(POOL_SIZE):
            s = s + xp[:, :, dh:dh + H, dw:dw + W]
            c = c + op[:, :, dh:dh + H, dw:dw + W]
    return s / c - x


if __name__ == "__main__":
    key = jax.random.PRNGKey(0)
    # Small NCHW input consistent with the module's forward.
    x = jax.random.normal(key, (2, 4, 16, 16), dtype=jnp.float32)

    out = pooling(x)
    jax.block_until_ready(out)

    ref = pooling_reference(x)
    assert out.shape == ref.shape
    assert jnp.allclose(out, ref, atol=1e-5, rtol=1e-5), "mismatch vs reference"

    print("KERNEL_OK")
</pallas_src>

<mosaic_0001>
module attributes {stable_mosaic.version = 11 : i64} {
  func.func @_pooling_kernel(%arg0: i32, %arg1: memref<5x256xf32, #tpu.memory_space<vmem>>, %arg2: memref<8x256xf32, #tpu.memory_space<vmem>>, %arg3: memref<8x256xf32, #tpu.memory_space<vmem>>) attributes {dimension_semantics = [#tpu.dimension_semantics<parallel>], iteration_bounds = array<i64: 1>, scalar_prefetch = 0 : i64, scratch_operands = 0 : i64, tpu.core_type = #tpu.core_type<tc>, window_params = [{pipeline_mode = #tpu.pipeline_mode<synchronous>, transform_indices = @transform_0, window_bounds = array<i64: 5, 256>}, {transform_indices = @transform_1, window_bounds = array<i64: 8, 256>}, {transform_indices = @transform_2, window_bounds = array<i64: 8, 256>}]} {
    %c0 = arith.constant 0 : index
    %c0_0 = arith.constant 0 : index
    %0 = vector.load %arg2[%c0, %c0_0] : memref<8x256xf32, #tpu.memory_space<vmem>>, vector<8x256xf32>
    %c0_1 = arith.constant 0 : index
    %c0_2 = arith.constant 0 : index
    %1 = vector.load %arg1[%c0_1, %c0_2] : memref<5x256xf32, #tpu.memory_space<vmem>>, vector<5x256xf32>
    %2 = vector.extract_strided_slice %1 {offsets = [0, 0], sizes = [1, 256], strides = [1, 1]} : vector<5x256xf32> to vector<1x256xf32>
    %3 = vector.extract_strided_slice %1 {offsets = [1, 0], sizes = [1, 256], strides = [1, 1]} : vector<5x256xf32> to vector<1x256xf32>
    %4 = vector.extract_strided_slice %1 {offsets = [2, 0], sizes = [1, 256], strides = [1, 1]} : vector<5x256xf32> to vector<1x256xf32>
    %5 = vector.extract_strided_slice %1 {offsets = [3, 0], sizes = [1, 256], strides = [1, 1]} : vector<5x256xf32> to vector<1x256xf32>
    %6 = vector.extract_strided_slice %1 {offsets = [4, 0], sizes = [1, 256], strides = [1, 1]} : vector<5x256xf32> to vector<1x256xf32>
    %7 = vector.extract_strided_slice %0 {offsets = [0, 240], sizes = [8, 16], strides = [1, 1]} : vector<8x256xf32> to vector<8x16xf32>
    %8 = vector.extract_strided_slice %0 {offsets = [0, 0], sizes = [8, 240], strides = [1, 1]} : vector<8x256xf32> to vector<8x240xf32>
    %9 = tpu.concatenate %7, %8 in 1 : vector<8x16xf32>, vector<8x240xf32> -> vector<8x256xf32>
    %10 = vector.extract_strided_slice %0 {offsets = [0, 16], sizes = [8, 240], strides = [1, 1]} : vector<8x256xf32> to vector<8x240xf32>
    %11 = vector.extract_strided_slice %0 {offsets = [0, 0], sizes = [8, 16], strides = [1, 1]} : vector<8x256xf32> to vector<8x16xf32>
    %12 = tpu.concatenate %10, %11 in 1 : vector<8x240xf32>, vector<8x16xf32> -> vector<8x256xf32>
    %13 = vector.broadcast %2 : vector<1x256xf32> to vector<8x256xf32>
    %14 = arith.mulf %9, %13 : vector<8x256xf32>
    %15 = arith.addf %0, %14 : vector<8x256xf32>
    %16 = vector.broadcast %3 : vector<1x256xf32> to vector<8x256xf32>
    %17 = arith.mulf %12, %16 : vector<8x256xf32>
    %18 = arith.addf %15, %17 : vector<8x256xf32>
    %19 = vector.extract_strided_slice %18 {offsets = [0, 255], sizes = [8, 1], strides = [1, 1]} : vector<8x256xf32> to vector<8x1xf32>
    %20 = vector.extract_strided_slice %18 {offsets = [0, 0], sizes = [8, 255], strides = [1, 1]} : vector<8x256xf32> to vector<8x255xf32>
    %21 = tpu.concatenate %19, %20 in 1 : vector<8x1xf32>, vector<8x255xf32> -> vector<8x256xf32>
    %22 = vector.extract_strided_slice %18 {offsets = [0, 1], sizes = [8, 255], strides = [1, 1]} : vector<8x256xf32> to vector<8x255xf32>
    %23 = vector.extract_strided_slice %18 {offsets = [0, 0], sizes = [8, 1], strides = [1, 1]} : vector<8x256xf32> to vector<8x1xf32>
    %24 = tpu.concatenate %22, %23 in 1 : vector<8x255xf32>, vector<8x1xf32> -> vector<8x256xf32>
    %25 = vector.broadcast %4 : vector<1x256xf32> to vector<8x256xf32>
    %26 = arith.mulf %18, %25 : vector<8x256xf32>
    %27 = vector.broadcast %5 : vector<1x256xf32> to vector<8x256xf32>
    %28 = arith.mulf %21, %27 : vector<8x256xf32>
    %29 = arith.addf %26, %28 : vector<8x256xf32>
    %30 = vector.broadcast %6 : vector<1x256xf32> to vector<8x256xf32>
    %31 = arith.mulf %24, %30 : vector<8x256xf32>
    %32 = arith.addf %29, %31 : vector<8x256xf32>
    %33 = arith.subf %32, %0 : vector<8x256xf32>
    %c0_3 = arith.constant 0 : index
    %c0_4 = arith.constant 0 : index
    %34 = vector.load %arg3[%c0_3, %c0_4] : memref<8x256xf32, #tpu.memory_space<vmem>>, vector<8x256xf32>
    tpu.vector_store %arg3[%c0_3, %c0_4], %33 {strides = array<i32>} : memref<8x256xf32, #tpu.memory_space<vmem>>, vector<8x256xf32>,
    return
  }
  func.func @transform_0(%arg0: i32) -> (i32, i32) {
    %c0_i32 = arith.constant 0 : i32
    %c0_i32_0 = arith.constant 0 : i32
    %c0_i32_1 = arith.constant 0 : i32
    return %c0_i32, %c0_i32_0 : i32, i32
  }
  func.func @transform_1(%arg0: i32) -> (i32, i32) {
    %c0_i32 = arith.constant 0 : i32
    %c0_i32_0 = arith.constant 0 : i32
    return %arg0, %c0_i32 : i32, i32
  }
  func.func @transform_2(%arg0: i32) -> (i32, i32) {
    %c0_i32 = arith.constant 0 : i32
    %c0_i32_0 = arith.constant 0 : i32
    return %arg0, %c0_i32 : i32, i32
  }
}

</mosaic_0001>

<llo_original>
// kernel: tpu_custom_call.1
$region0: #{tpu_custom_call.1}
  #allocation0 [shape = 'u32[]', space=smem, size = 0x4, offset = 0x4, fixed_abs, tag = 'smem constant byte address 0x4 - core index']
  #allocation1 [shape = 'u32[144,128]{1,0:T(1,128)}', space=vmem, size = 0x12000, scoped, tag = 'internal scratch']
  %s0 = inlined_call_operand.hbm [shape: f32[5,256], index: 0, kind: input, shape index: {}]
  %s1 = inlined_call_operand.hbm [shape: f32[8,256], index: 1, kind: input, shape index: {}]
  %s2 = inlined_call_operand.hbm [shape: f32[8,256], index: 2, kind: output, shape index: {}]
  %s3 = sld [smem:[#allocation0]]
  $region26: #{tpu_custom_call.1} parent=0
    _
  %s5 = ssub.s32 1, %s3
  %s6 = scalar_select 0, %s5, %s3
  $region1: #{tpu_custom_call.1} parent=0
    #allocation2 [shape = 'u8[8192]{0}', space=vmem, size = 0x2000, scoped, tag = 'input window, operand 0, single buffered']
    #allocation3 [shape = 's32[1]{0}', space=sflag, size = 0x4, scoped, tag = 'scoped memory for tpu_custom_call.1']
    #allocation4 [shape = 's32[1]{0}', space=sflag, size = 0x4, scoped, tag = 'scoped memory for tpu_custom_call.1']
    #allocation5 [shape = 'u8[8192]{0}', space=vmem, size = 0x2000, scoped, tag = 'input window, operand 1, single buffered']
    #allocation6 [shape = 's32[1]{0}', space=sflag, size = 0x4, scoped, tag = 'scoped memory for tpu_custom_call.1']
    #allocation7 [shape = 'u8[8192]{0}', space=vmem, size = 0x2000, scoped, tag = 'output window, operand 0, single buffered']
    %7 = vsyncpa [#allocation3], 0
    %8 = vsyncpa [#allocation6], 0
    %9 = vsyncpa [#allocation4], 0
    // Predicated region
    $region2: #{tpu_custom_call.1} parent=1 // pred_check
      _
    $region3: #{tpu_custom_call.1} parent=1 // pred_check_branch
      %11 = sbr.rel (0) target = $region5
    $region4: #{tpu_custom_call.1} parent=1 // pred_region
      %s13 = ssub.s32 256, 256
      %14 = vsyncadd [#allocation3], %s13
      %s16 = sshll.u32 [#allocation2], 4
      %s17 = int_to_ptr.vmem [resolvable:$true] %s16
      %19 = dma.hbm_to_vmem [thread:$0]  %s0, 256, %s17, [#allocation3]
    $region5: #{tpu_custom_call.1} parent=1 // pred_fallthru
      _
    // Predicated region
    $region6: #{tpu_custom_call.1} parent=1 // pred_check
      _
    $region7: #{tpu_custom_call.1} parent=1 // pred_check_branch
      %21 = sbr.rel (0) target = $region9
    $region8: #{tpu_custom_call.1} parent=1 // pred_region
      %s23 = ssub.s32 256, 256
      %24 = vsyncadd [#allocation6], %s23
      %s26 = sshll.u32 [#allocation5], 4
      %s27 = int_to_ptr.vmem [resolvable:$true] %s26
      %29 = dma.hbm_to_vmem [thread:$0]  %s1, 256, %s27, [#allocation6]
    $region9: #{tpu_custom_call.1} parent=1 // pred_fallthru
      _
    // Predicated region
    $region10: #{tpu_custom_call.1} parent=1 // pred_check
      _
    $region11: #{tpu_custom_call.1} parent=1 // pred_check_branch
      %31 = sbr.rel (0) target = $region13
    $region12: #{tpu_custom_call.1} parent=1 // pred_region
      %32 = dma.done [#allocation3], 256
    $region13: #{tpu_custom_call.1} parent=1 // pred_fallthru
      _
    // Predicated region
    $region14: #{tpu_custom_call.1} parent=1 // pred_check
      _
    $region15: #{tpu_custom_call.1} parent=1 // pred_check_branch
      %34 = sbr.rel (0) target = $region17
    $region16: #{tpu_custom_call.1} parent=1 // pred_region
      %35 = dma.done [#allocation6], 256
    $region17: #{tpu_custom_call.1} parent=1 // pred_fallthru
      _
    %v36 = vld [vmem:[#allocation5] sm:$0xff]
    %v37 = vld [vmem:[#allocation5 + $0x8] sm:$0xff]
    %v38 = vld [vmem:[#allocation2] sm:$0x1f]
    %v39 = vld [vmem:[#allocation2 + $0x8] sm:$0x1f]
    %41 = vrot.lane.b32.xlu0 %v37, 16
    %v42 = vpop.permute.xlu0 %41
    %45 = vrot.lane.b32.xlu0 %v36, 16
    %v46 = vpop.permute.xlu0 %45
    %vm47 = vcmask 130048
    %v48 = vsel %vm47, %v46, %v42
    %v51 = vsel %vm47, %v42, %v46
    %52 = vrot.lane.b32.xlu0 %v36, 112
    %v53 = vpop.permute.xlu0 %52
    %54 = vrot.lane.b32.xlu0 %v37, 112
    %v55 = vpop.permute.xlu0 %54
    %vm56 = vcmask 916480
    %v57 = vsel %vm56, %v53, %v55
    %v61 = vsel %vm56, %v55, %v53
    %v62 = vlaneseq
    %v63 = vshrl.u32 %v62, 7
    %v64 = vsub.s32 0, %v63
    %v65 = vrot.slane %v38, %v64
    %v66 = vlaneseq
    %v67 = vshrl.u32 %v66, 7
    %v68 = vsub.s32 0, %v67
    %v69 = vrot.slane %v39, %v68
    %v70 = vmul.f32 %v51, %v65
    %v71 = vmul.f32 %v48, %v69
    %v72 = vadd.f32 %v36, %v70
    %v73 = vadd.f32 %v37, %v71
    %v74 = vlaneseq
    %v75 = vshrl.u32 %v74, 7
    %v76 = vsub.s32 1, %v75
    %v77 = vrot.slane %v38, %v76
    %v78 = vlaneseq
    %v79 = vshrl.u32 %v78, 7
    %v80 = vsub.s32 1, %v79
    %v81 = vrot.slane %v39, %v80
    %v82 = vmul.f32 %v57, %v77
    %v83 = vmul.f32 %v61, %v81
    %v84 = vadd.f32 %v72, %v82
    %v85 = vadd.f32 %v73, %v83
    %87 = vrot.lane.b32.xlu0 %v85, 1
    %v88 = vpop.permute.xlu0 %87
    %91 = vrot.lane.b32.xlu0 %v84, 1
    %v92 = vpop.permute.xlu0 %91
    %vm93 = vcmask 7168
    %v94 = vsel %vm93, %v92, %v88
    %v97 = vsel %vm93, %v88, %v92
    %98 = vrot.lane.b32.xlu0 %v84, 127
    %v99 = vpop.permute.xlu0 %98
    %100 = vrot.lane.b32.xlu0 %v85, 127
    %v101 = vpop.permute.xlu0 %100
    %vm102 = vcmask 1039360
    %v103 = vsel %vm102, %v99, %v101
    %v107 = vsel %vm102, %v101, %v99
    %v108 = vlaneseq
    %v109 = vshrl.u32 %v108, 7
    %v110 = vsub.s32 2, %v109
    %v111 = vrot.slane %v38, %v110
    %v112 = vlaneseq
    %v113 = vshrl.u32 %v112, 7
    %v114 = vsub.s32 2, %v113
    %v115 = vrot.slane %v39, %v114
    %v116 = vmul.f32 %v84, %v111
    %v117 = vmul.f32 %v85, %v115
    %v118 = vlaneseq
    %v119 = vshrl.u32 %v118, 7
    %v120 = vsub.s32 3, %v119
    %v121 = vrot.slane %v38, %v120
    %v122 = vlaneseq
    %v123 = vshrl.u32 %v122, 7
    %v124 = vsub.s32 3, %v123
    %v125 = vrot.slane %v39, %v124
    %v126 = vmul.f32 %v97, %v121
    %v127 = vmul.f32 %v94, %v125
    %v128 = vadd.f32 %v116, %v126
    %v129 = vadd.f32 %v117, %v127
    %v130 = vlaneseq
    %v131 = vshrl.u32 %v130, 7
    %v132 = vsub.s32 4, %v131
    %v133 = vrot.slane %v38, %v132
    %v134 = vlaneseq
    %v135 = vshrl.u32 %v134, 7
    %v136 = vsub.s32 4, %v135
    %v137 = vrot.slane %v39, %v136
    %v138 = vmul.f32 %v103, %v133
    %v139 = vmul.f32 %v107, %v137
    %v140 = vadd.f32 %v128, %v138
    %v141 = vadd.f32 %v129, %v139
    %v142 = vsub.f32 %v140, %v36
    %v143 = vsub.f32 %v141, %v37
    %144 = vst [vmem:[#allocation7] sm:$0xff] %v142
    %145 = vst [vmem:[#allocation7 + $0x8] sm:$0xff] %v143
    // Predicated region
    $region18: #{tpu_custom_call.1} parent=1 // pred_check
      _
    $region19: #{tpu_custom_call.1} parent=1 // pred_check_branch
      %147 = sbr.rel (0) target = $region21
    $region20: #{tpu_custom_call.1} parent=1 // pred_region
      %s149 = ssub.s32 256, 256
      %150 = vsyncadd [#allocation4], %s149
      %s152 = sshll.u32 [#allocation7], 4
      %s153 = int_to_ptr.vmem [resolvable:$true] %s152
      %155 = dma.vmem_to_hbm [thread:$0]  %s153, 256, %s2, [#allocation4]
    $region21: #{tpu_custom_call.1} parent=1 // pred_fallthru
      _
    // Predicated region
    $region22: #{tpu_custom_call.1} parent=1 // pred_check
      _
    $region23: #{tpu_custom_call.1} parent=1 // pred_check_branch
      %157 = sbr.rel (0) target = $region25
    $region24: #{tpu_custom_call.1} parent=1 // pred_region
      %158 = dma.done [#allocation4], 256
    $region25: #{tpu_custom_call.1} parent=1 // pred_fallthru
      _
    %159 = vsyncpa [#allocation3], 1
    %160 = vsyncpa [#allocation6], 1
    %161 = vsyncpa [#allocation4], 1

</llo_original>
